<compile_context>
chip_gen: v6e
topology: v6e:2x2x1
jax: 0.10.0
libtpu: 0.0.40
codegen_flags: <defaults>
</compile_context>

<pallas_src>
import functools

import jax
import jax.numpy as jnp
import numpy as np
from jax.experimental import pallas as pl
from jax.experimental.pallas import tpu as pltpu

_HIGHEST = jax.lax.Precision.HIGHEST   # one-time weight folding + pure-JAX reference only


def _round_up(n, m):
    return ((n + m - 1) // m) * m


def _leaky(x, slope=0.2):
    # max(x, slope*x) == LeakyReLU(slope) for 0 < slope < 1 (single VPU max, no select).
    return jnp.maximum(x, slope * x)


# --------------------------------------------------------------------------------------
# Kernel: one batch block, fused (conv+fc1) -> LeakyReLU -> fc2 -> LeakyReLU
#         -> LayerNorm(no affine) -> cosine classifier -> softmax.
# --------------------------------------------------------------------------------------
def emo_kernel(ncls, x_ref, wbig_ref, b1_ref, w2t_ref, b2_ref, wnt_ref, out_ref):
    # fc1 with Conv1d(k=1) folded in: single (bm, Di1*Di2) @ (Di1*Di2, Fc1) MXU matmul.
    l1 = jnp.dot(x_ref[...], wbig_ref[...],
                 preferred_element_type=jnp.float32) + b1_ref[...]
    l1 = _leaky(l1)

    # fc2 (weight pre-transposed to (Fc1, Fc2) outside) + LeakyReLU(0.2).
    w2t = w2t_ref[...]
    l2 = jnp.dot(l1.astype(w2t.dtype), w2t,
                 preferred_element_type=jnp.float32) + b2_ref[...]
    l2 = _leaky(l2)

    # LayerNorm(Fc2, elementwise_affine=False), eps=1e-5; fused single-pass statistics.
    mu = jnp.mean(l2, axis=-1, keepdims=True)
    var = jnp.maximum(jnp.mean(l2 * l2, axis=-1, keepdims=True) - mu * mu, 0.0)
    ln = (l2 - mu) * jax.lax.rsqrt(var + 1e-5)

    # Cosine classifier: W rows are pre-L2-normalized, padded to npad=128 classes and
    # transposed outside, so this is a plain dot with a lane-dense (bm, 128) output.
    wnt = wnt_ref[...]
    logits = jnp.dot(ln.astype(wnt.dtype), wnt,
                     preferred_element_type=jnp.float32)            # (bm, npad)

    # Softmax over the real classes; padded class lanes masked to -1e30 -> prob 0.
    lane = jax.lax.broadcasted_iota(jnp.int32, logits.shape, 1)
    logits = jnp.where(lane < ncls, logits, -1e30)
    m = jnp.max(logits, axis=-1, keepdims=True)
    e = jnp.exp(logits - m)
    denom = jnp.sum(e, axis=-1, keepdims=True)
    out_ref[...] = (e * pl.reciprocal(denom, approx=True)).astype(out_ref.dtype)


# --------------------------------------------------------------------------------------
# One-time parameter preprocessing (call once; NOT on the per-forward path).
# --------------------------------------------------------------------------------------
def prepare_emo_params(params, *, matmul_dtype=jnp.bfloat16):
    """Fold Conv1d(k=1) into fc1, normalize/pad/transpose weights, cast MXU operands."""
    wconv, bconv, w1, b1, w2, b2, wcls = (jnp.asarray(p, jnp.float32) for p in params)
    Drc = wconv.shape[0]
    Di2 = wconv.shape[1]
    Fc1 = w1.shape[0]
    Fc2 = w2.shape[0]
    ncls = int(wcls.shape[0])
    Di1 = w1.shape[1] // Drc
    K = Di1 * Di2
    npad = _round_up(ncls, 128)                       # lane-dense classifier output width

    # PyTorch: y = conv(x.transpose(2,1)); flat[b, o*Di1 + t] = y[b, o, t]; l1 = fc1(flat).
    # Fold:   Wbig[t*Di2 + c, f] = sum_o wconv[o, c] * w1[f, o*Di1 + t]
    #         b1_eff[f]          = b1[f] + sum_{o,t} bconv[o] * w1[f, o*Di1 + t]
    w1_r = w1.reshape(Fc1, Drc, Di1)                                        # [f, o, t]
    w_big = jnp.einsum('oc,fot->tcf', wconv, w1_r,
                       precision=_HIGHEST).reshape(K, Fc1)                  # (Di1*Di2, Fc1)
    b1_eff = (b1 + jnp.einsum('o,fot->f', bconv, w1_r,
                              precision=_HIGHEST)).reshape(1, Fc1)

    w2t = w2.T                                                              # (Fc1, Fc2)
    b2_row = b2.reshape(1, Fc2)

    # F.normalize(W): row-wise L2 normalization, padded to npad rows, pre-transposed.
    nrm = jnp.sqrt(jnp.sum(wcls * wcls, axis=-1, keepdims=True))
    wn = wcls / jnp.maximum(nrm, 1e-12)
    wnt = jnp.pad(wn, ((0, npad - ncls), (0, 0))).T                         # (Fc2, npad)

    return (w_big.astype(matmul_dtype), b1_eff, w2t.astype(matmul_dtype),
            b2_row, wnt.astype(matmul_dtype), ncls)


# --------------------------------------------------------------------------------------
# Forward pass (prepared-weight signature; ncls / block_b are static).
# --------------------------------------------------------------------------------------
@functools.partial(jax.jit, static_argnames=("ncls", "block_b"))
def model_emo_forward(x, w_big, b1_eff, w2t, b2_row, wnt, *, ncls, block_b=1024):
    """x: (B, Di1, Di2) float — same layout the PyTorch module's forward expects."""
    B = x.shape[0]
    K, Fc1 = w_big.shape
    Fc2, npad = wnt.shape

    # Flatten (flat index = t*Di2 + c, matching the folded weight) and feed the MXU bf16.
    # (Ideally the upstream producer already emits bf16; this cast is one cheap pass.)
    xf = x.reshape(B, K).astype(w_big.dtype)

    # Batch blocking: large blocks amortize the ~0.35us/grid-step overhead; for B > 256
    # force >= 2 grid steps so both v7x TensorCores get work ("parallel" axis). Ragged
    # last block handled by Pallas — no full-array pad of the input.
    blk = max(256, _round_up(block_b, 256))
    bm = B if B <= 256 else min(blk, _round_up(pl.cdiv(B, 2), 256))
    grid_b = pl.cdiv(B, bm)

    out = pl.pallas_call(
        functools.partial(emo_kernel, ncls),
        out_shape=jax.ShapeDtypeStruct((B, npad), jnp.float32),
        grid=(grid_b,),
        in_specs=[
            pl.BlockSpec((bm, K), lambda i: (i, 0)),        # x block (bf16)
            pl.BlockSpec((K, Fc1), lambda i: (0, 0)),       # folded conv+fc1 weight (resident)
            pl.BlockSpec((1, Fc1), lambda i: (0, 0)),       # folded fc1 bias (f32)
            pl.BlockSpec((Fc1, Fc2), lambda i: (0, 0)),     # fc2 weight, pre-transposed
            pl.BlockSpec((1, Fc2), lambda i: (0, 0)),       # fc2 bias (f32)
            pl.BlockSpec((Fc2, npad), lambda i: (0, 0)),    # normalized classifier weight^T
        ],
        out_specs=pl.BlockSpec((bm, npad), lambda i: (i, 0)),
        compiler_params=pltpu.CompilerParams(
            dimension_semantics=("parallel",)),
    )(xf, w_big, b1_eff, w2t, b2_row, wnt)

    return out[:, :ncls]


# --------------------------------------------------------------------------------------
# Pure-JAX f32 mirror of the PyTorch forward, for verification.
# --------------------------------------------------------------------------------------
def model_emo_reference(x, params):
    wconv, bconv, w1, b1, w2, b2, wcls = params
    B = x.shape[0]
    xt = jnp.swapaxes(x, 1, 2)                                        # (B, Di2, Di1)
    y = jnp.einsum('oc,bct->bot', wconv, xt,
                   precision=_HIGHEST) + bconv[None, :, None]         # (B, Drc, Di1)
    flat = y.reshape(B, -1)
    l1 = _leaky(jnp.dot(flat, w1.T, precision=_HIGHEST) + b1)
    l2 = _leaky(jnp.dot(l1, w2.T, precision=_HIGHEST) + b2)
    mu = jnp.mean(l2, axis=-1, keepdims=True)
    var = jnp.mean((l2 - mu) ** 2, axis=-1, keepdims=True)
    ln = (l2 - mu) / jnp.sqrt(var + 1e-5)
    nrm = jnp.sqrt(jnp.sum(wcls * wcls, axis=-1, keepdims=True))
    wn = wcls / jnp.maximum(nrm, 1e-12)
    logits = jnp.dot(ln, wn.T, precision=_HIGHEST)
    return jax.nn.softmax(logits, axis=1)


if __name__ == "__main__":
    # Module hyper-params (defaults of model_emo)
    num_classes, Di1, Di2, Drc, Fc1, Fc2 = 4, 16, 32, 32, 64, 64
    B = 2

    key = jax.random.PRNGKey(0)
    ks = jax.random.split(key, 8)
    x = jax.random.normal(ks[0], (B, Di1, Di2), jnp.float32)

    kconv = 1.0 / np.sqrt(Di2)          # Conv1d(k=1) fan-in
    k1 = 1.0 / np.sqrt(Di1 * Drc)       # fc1 fan-in
    k2 = 1.0 / np.sqrt(Fc1)             # fc2 fan-in
    params = (
        jax.random.uniform(ks[1], (Drc, Di2), jnp.float32, -kconv, kconv),      # cred.weight (k=1 squeezed)
        jax.random.uniform(ks[2], (Drc,), jnp.float32, -kconv, kconv),          # cred.bias
        jax.random.uniform(ks[3], (Fc1, Di1 * Drc), jnp.float32, -k1, k1),      # fc1.weight
        jax.random.uniform(ks[4], (Fc1,), jnp.float32, -k1, k1),                # fc1.bias
        jax.random.uniform(ks[5], (Fc2, Fc1), jnp.float32, -k2, k2),            # fc2.weight
        jax.random.uniform(ks[6], (Fc2,), jnp.float32, -k2, k2),                # fc2.bias
        jax.random.uniform(ks[7], (num_classes, Fc2), jnp.float32, -0.25, 0.25) # W (cosine classifier)
    )

    # One-time weight preprocessing, then the fused forward.
    w_big, b1_eff, w2t, b2_row, wnt, ncls = prepare_emo_params(params)
    out = jax.block_until_ready(
        model_emo_forward(x, w_big, b1_eff, w2t, b2_row, wnt, ncls=ncls))
    ref = jax.block_until_ready(model_emo_reference(x, params))

    assert out.shape == (B, num_classes)
    # bf16 MXU operands + f32 accumulation + approx reciprocal: typical error ~1e-3.
    np.testing.assert_allclose(np.asarray(out), np.asarray(ref), atol=2e-2, rtol=2e-2)
    np.testing.assert_allclose(np.asarray(out).sum(axis=1), np.ones(B), atol=5e-3)
    print("KERNEL_OK")
</pallas_src>

<mosaic_0001>
module attributes {stable_mosaic.version = 11 : i64} {
  func.func @emo_kernel(%arg0: i32, %arg1: memref<2x512xbf16, #tpu.memory_space<vmem>>, %arg2: memref<512x64xbf16, #tpu.memory_space<vmem>>, %arg3: memref<1x64xf32, #tpu.memory_space<vmem>>, %arg4: memref<64x64xbf16, #tpu.memory_space<vmem>>, %arg5: memref<1x64xf32, #tpu.memory_space<vmem>>, %arg6: memref<64x128xbf16, #tpu.memory_space<vmem>>, %arg7: memref<2x128xf32, #tpu.memory_space<vmem>>) attributes {dimension_semantics = [#tpu.dimension_semantics<parallel>], iteration_bounds = array<i64: 1>, scalar_prefetch = 0 : i64, scratch_operands = 0 : i64, tpu.core_type = #tpu.core_type<tc>, window_params = [{transform_indices = @transform_0, window_bounds = array<i64: 2, 512>}, {pipeline_mode = #tpu.pipeline_mode<synchronous>, transform_indices = @transform_1, window_bounds = array<i64: 512, 64>}, {pipeline_mode = #tpu.pipeline_mode<synchronous>, transform_indices = @transform_2, window_bounds = array<i64: 1, 64>}, {pipeline_mode = #tpu.pipeline_mode<synchronous>, transform_indices = @transform_3, window_bounds = array<i64: 64, 64>}, {pipeline_mode = #tpu.pipeline_mode<synchronous>, transform_indices = @transform_4, window_bounds = array<i64: 1, 64>}, {pipeline_mode = #tpu.pipeline_mode<synchronous>, transform_indices = @transform_5, window_bounds = array<i64: 64, 128>}, {transform_indices = @transform_6, window_bounds = array<i64: 2, 128>}]} {
    %c0 = arith.constant 0 : index
    %c0_0 = arith.constant 0 : index
    %0 = vector.load %arg1[%c0, %c0_0] : memref<2x512xbf16, #tpu.memory_space<vmem>>, vector<2x512xbf16>
    %c0_1 = arith.constant 0 : index
    %c0_2 = arith.constant 0 : index
    %1 = vector.load %arg2[%c0_1, %c0_2] : memref<512x64xbf16, #tpu.memory_space<vmem>>, vector<512x64xbf16>
    %cst = arith.constant dense<0.000000e+00> : vector<2x64xf32>
    %2 = tpu.matmul %0, %1, %cst {dimension_numbers = #tpu.dot_dimension_numbers<[1], [0], [0], [1], [0, 0, 1, 1], [], []>} : vector<2x512xbf16>, vector<512x64xbf16>, vector<2x64xf32> -> vector<2x64xf32>
    %c0_3 = arith.constant 0 : index
    %c0_4 = arith.constant 0 : index
    %3 = vector.load %arg3[%c0_3, %c0_4] : memref<1x64xf32, #tpu.memory_space<vmem>>, vector<1x64xf32>
    %4 = vector.broadcast %3 : vector<1x64xf32> to vector<2x64xf32>
    %5 = arith.addf %2, %4 : vector<2x64xf32>
    %cst_5 = arith.constant 2.000000e-01 : f32
    %6 = vector.broadcast %cst_5 : f32 to vector<2x64xf32>
    %7 = arith.mulf %6, %5 : vector<2x64xf32>
    %8 = arith.maximumf %5, %7 : vector<2x64xf32>
    %c0_6 = arith.constant 0 : index
    %c0_7 = arith.constant 0 : index
    %9 = vector.load %arg4[%c0_6, %c0_7] : memref<64x64xbf16, #tpu.memory_space<vmem>>, vector<64x64xbf16>
    %10 = arith.truncf %8 : vector<2x64xf32> to vector<2x64xbf16>
    %cst_8 = arith.constant dense<0.000000e+00> : vector<2x64xf32>
    %11 = tpu.matmul %10, %9, %cst_8 {dimension_numbers = #tpu.dot_dimension_numbers<[1], [0], [0], [1], [0, 0, 1, 1], [], []>} : vector<2x64xbf16>, vector<64x64xbf16>, vector<2x64xf32> -> vector<2x64xf32>
    %c0_9 = arith.constant 0 : index
    %c0_10 = arith.constant 0 : index
    %12 = vector.load %arg5[%c0_9, %c0_10] : memref<1x64xf32, #tpu.memory_space<vmem>>, vector<1x64xf32>
    %13 = vector.broadcast %12 : vector<1x64xf32> to vector<2x64xf32>
    %14 = arith.addf %11, %13 : vector<2x64xf32>
    %cst_11 = arith.constant 2.000000e-01 : f32
    %15 = vector.broadcast %cst_11 : f32 to vector<2x64xf32>
    %16 = arith.mulf %15, %14 : vector<2x64xf32>
    %17 = arith.maximumf %14, %16 : vector<2x64xf32>
    %cst_12 = arith.constant dense<0.000000e+00> : vector<2xf32>
    %18 = vector.multi_reduction <add>, %17, %cst_12 [1] : vector<2x64xf32> to vector<2xf32>
    %19 = vector.shape_cast %18 : vector<2xf32> to vector<2x1xf32>
    %cst_13 = arith.constant 6.400000e+01 : f32
    %20 = vector.broadcast %cst_13 : f32 to vector<2x1xf32>
    %21 = arith.divf %19, %20 : vector<2x1xf32>
    %22 = arith.mulf %17, %17 : vector<2x64xf32>
    %cst_14 = arith.constant dense<0.000000e+00> : vector<2xf32>
    %23 = vector.multi_reduction <add>, %22, %cst_14 [1] : vector<2x64xf32> to vector<2xf32>
    %24 = vector.shape_cast %23 : vector<2xf32> to vector<2x1xf32>
    %cst_15 = arith.constant 6.400000e+01 : f32
    %25 = vector.broadcast %cst_15 : f32 to vector<2x1xf32>
    %26 = arith.divf %24, %25 : vector<2x1xf32>
    %27 = arith.mulf %21, %21 : vector<2x1xf32>
    %28 = arith.subf %26, %27 : vector<2x1xf32>
    %cst_16 = arith.constant 0.000000e+00 : f32
    %29 = vector.broadcast %cst_16 : f32 to vector<2x1xf32>
    %30 = arith.maximumf %28, %29 : vector<2x1xf32>
    %31 = vector.broadcast %21 : vector<2x1xf32> to vector<2x64xf32>
    %32 = arith.subf %17, %31 : vector<2x64xf32>
    %cst_17 = arith.constant 9.99999974E-6 : f32
    %33 = vector.broadcast %cst_17 : f32 to vector<2x1xf32>
    %34 = arith.addf %30, %33 : vector<2x1xf32>
    %35 = math.rsqrt %34 : vector<2x1xf32>
    %36 = vector.broadcast %35 : vector<2x1xf32> to vector<2x64xf32>
    %37 = arith.mulf %32, %36 : vector<2x64xf32>
    %c0_18 = arith.constant 0 : index
    %c0_19 = arith.constant 0 : index
    %38 = vector.load %arg6[%c0_18, %c0_19] : memref<64x128xbf16, #tpu.memory_space<vmem>>, vector<64x128xbf16>
    %39 = arith.truncf %37 : vector<2x64xf32> to vector<2x64xbf16>
    %cst_20 = arith.constant dense<0.000000e+00> : vector<2x128xf32>
    %40 = tpu.matmul %39, %38, %cst_20 {dimension_numbers = #tpu.dot_dimension_numbers<[1], [0], [0], [1], [0, 0, 1, 1], [], []>} : vector<2x64xbf16>, vector<64x128xbf16>, vector<2x128xf32> -> vector<2x128xf32>
    %41 = tpu.iota {dimensions = array<i32: 1>} : vector<2x128xi32>
    %c4_i32 = arith.constant 4 : i32
    %42 = vector.broadcast %c4_i32 : i32 to vector<2x128xi32>
    %43 = arith.cmpi slt, %41, %42 : vector<2x128xi32>
    %cst_21 = arith.constant -1.000000e+30 : f32
    %44 = vector.broadcast %cst_21 : f32 to vector<2x128xf32>
    %45 = arith.select %43, %40, %44 : vector<2x128xi1>, vector<2x128xf32>
    %cst_22 = arith.constant dense<0xFF800000> : vector<2xf32>
    %46 = vector.multi_reduction <maximumf>, %45, %cst_22 [1] : vector<2x128xf32> to vector<2xf32>
    %47 = vector.shape_cast %46 : vector<2xf32> to vector<2x1xf32>
    %48 = vector.broadcast %47 : vector<2x1xf32> to vector<2x128xf32>
    %49 = arith.subf %45, %48 : vector<2x128xf32>
    %50 = math.exp %49 : vector<2x128xf32>
    %cst_23 = arith.constant dense<0.000000e+00> : vector<2xf32>
    %51 = vector.multi_reduction <add>, %50, %cst_23 [1] : vector<2x128xf32> to vector<2xf32>
    %52 = vector.shape_cast %51 : vector<2xf32> to vector<2x1xf32>
    %53 = tpu.reciprocal %52 {approx = true} : vector<2x1xf32> -> vector<2x1xf32>
    %54 = vector.broadcast %53 : vector<2x1xf32> to vector<2x128xf32>
    %55 = arith.mulf %50, %54 : vector<2x128xf32>
    %c0_24 = arith.constant 0 : index
    %c0_25 = arith.constant 0 : index
    %56 = vector.load %arg7[%c0_24, %c0_25] : memref<2x128xf32, #tpu.memory_space<vmem>>, vector<2x128xf32>
    tpu.vector_store %arg7[%c0_24, %c0_25], %55 {strides = array<i32>} : memref<2x128xf32, #tpu.memory_space<vmem>>, vector<2x128xf32>,
    return
  }
  func.func @transform_0(%arg0: i32) -> (i32, i32) {
    %c0_i32 = arith.constant 0 : i32
    %c0_i32_0 = arith.constant 0 : i32
    return %arg0, %c0_i32 : i32, i32
  }
  func.func @transform_1(%arg0: i32) -> (i32, i32) {
    %c0_i32 = arith.constant 0 : i32
    %c0_i32_0 = arith.constant 0 : i32
    %c0_i32_1 = arith.constant 0 : i32
    return %c0_i32, %c0_i32_0 : i32, i32
  }
  func.func @transform_2(%arg0: i32) -> (i32, i32) {
    %c0_i32 = arith.constant 0 : i32
    %c0_i32_0 = arith.constant 0 : i32
    %c0_i32_1 = arith.constant 0 : i32
    return %c0_i32, %c0_i32_0 : i32, i32
  }
  func.func @transform_3(%arg0: i32) -> (i32, i32) {
    %c0_i32 = arith.constant 0 : i32
    %c0_i32_0 = arith.constant 0 : i32
    %c0_i32_1 = arith.constant 0 : i32
    return %c0_i32, %c0_i32_0 : i32, i32
  }
  func.func @transform_4(%arg0: i32) -> (i32, i32) {
    %c0_i32 = arith.constant 0 : i32
    %c0_i32_0 = arith.constant 0 : i32
    %c0_i32_1 = arith.constant 0 : i32
    return %c0_i32, %c0_i32_0 : i32, i32
  }
  func.func @transform_5(%arg0: i32) -> (i32, i32) {
    %c0_i32 = arith.constant 0 : i32
    %c0_i32_0 = arith.constant 0 : i32
    %c0_i32_1 = arith.constant 0 : i32
    return %c0_i32, %c0_i32_0 : i32, i32
  }
  func.func @transform_6(%arg0: i32) -> (i32, i32) {
    %c0_i32 = arith.constant 0 : i32
    %c0_i32_0 = arith.constant 0 : i32
    return %arg0, %c0_i32 : i32, i32
  }
}

</mosaic_0001>

<llo_original>
// kernel: model_emo_forward.1
$region0: #{model_emo_forward.1}
  #allocation0 [shape = 'u32[]', space=smem, size = 0x4, offset = 0x4, fixed_abs, tag = 'smem constant byte address 0x4 - core index']
  #allocation1 [shape = 'u32[144,128]{1,0:T(1,128)}', space=vmem, size = 0x12000, scoped, tag = 'internal scratch']
  %s0 = inlined_call_operand.vmem [shape: bf16[2,512], index: 0, kind: input, shape index: {}]
  %s1 = inlined_call_operand.vmem [shape: bf16[512,64], index: 1, kind: input, shape index: {}]
  %s2 = inlined_call_operand.vmem [shape: f32[1,64], index: 2, kind: input, shape index: {}]
  %s3 = inlined_call_operand.vmem [shape: bf16[64,64], index: 3, kind: input, shape index: {}]
  %s4 = inlined_call_operand.vmem [shape: f32[1,64], index: 4, kind: input, shape index: {}]
  %s5 = inlined_call_operand.vmem [shape: bf16[64,128], index: 5, kind: input, shape index: {}]
  %s6 = inlined_call_operand.hbm [shape: f32[2,128], index: 6, kind: output, shape index: {}]
  %s7 = sld [smem:[#allocation0]]
  $region34: #{model_emo_forward.1} parent=0
    _
  %s9 = ssub.s32 1, %s7
  %s10 = scalar_select 0, %s9, %s7
  $region1: #{model_emo_forward.1} parent=0
    #allocation2 [shape = 'u8[1024]{0}', space=vmem, size = 0x400, scoped, tag = 'output window, operand 0, single buffered']
    #allocation3 [shape = 's32[1]{0}', space=sflag, size = 0x4, scoped, tag = 'scoped memory for model_emo_forward.1']
    %11 = vsyncpa [#allocation3], 0
    // Predicated region
    $region2: #{model_emo_forward.1} parent=1 // pred_check
      _
    $region3: #{model_emo_forward.1} parent=1 // pred_check_branch
      %13 = sbr.rel (0) target = $region5
    $region4: #{model_emo_forward.1} parent=1 // pred_region
      _
    $region5: #{model_emo_forward.1} parent=1 // pred_fallthru
      _
    // Predicated region
    $region6: #{model_emo_forward.1} parent=1 // pred_check
      _
    $region7: #{model_emo_forward.1} parent=1 // pred_check_branch
      %15 = sbr.rel (0) target = $region9
    $region8: #{model_emo_forward.1} parent=1 // pred_region
      _
    $region9: #{model_emo_forward.1} parent=1 // pred_fallthru
      _
    // Predicated region
    $region10: #{model_emo_forward.1} parent=1 // pred_check
      _
    $region11: #{model_emo_forward.1} parent=1 // pred_check_branch
      %17 = sbr.rel (0) target = $region13
    $region12: #{model_emo_forward.1} parent=1 // pred_region
      _
    $region13: #{model_emo_forward.1} parent=1 // pred_fallthru
      _
    // Predicated region
    $region14: #{model_emo_forward.1} parent=1 // pred_check
      _
    $region15: #{model_emo_forward.1} parent=1 // pred_check_branch
      %19 = sbr.rel (0) target = $region17
    $region16: #{model_emo_forward.1} parent=1 // pred_region
      _
    $region17: #{model_emo_forward.1} parent=1 // pred_fallthru
      _
    // Predicated region
    $region18: #{model_emo_forward.1} parent=1 // pred_check
      _
    $region19: #{model_emo_forward.1} parent=1 // pred_check_branch
      %21 = sbr.rel (0) target = $region21
    $region20: #{model_emo_forward.1} parent=1 // pred_region
      _
    $region21: #{model_emo_forward.1} parent=1 // pred_fallthru
      _
    // Predicated region
    $region22: #{model_emo_forward.1} parent=1 // pred_check
      _
    $region23: #{model_emo_forward.1} parent=1 // pred_check_branch
      %23 = sbr.rel (0) target = $region25
    $region24: #{model_emo_forward.1} parent=1 // pred_region
      _
    $region25: #{model_emo_forward.1} parent=1 // pred_fallthru
      _
    %v25 = vld [vmem:[%s0] sm:$0xf]
    %v26 = vld [vmem:[%s1] sm:$0xf]
    %v27 = vld [vmem:[%s1 + $0x4] sm:$0xf]
    %v28 = vld [vmem:[%s1 + $0x8] sm:$0xf]
    %v29 = vld [vmem:[%s1 + $0xc] sm:$0xf]
    %v30 = vld [vmem:[%s1 + $0x10] sm:$0xf]
    %v31 = vld [vmem:[%s1 + $0x14] sm:$0xf]
    %v32 = vld [vmem:[%s1 + $0x18] sm:$0xf]
    %v33 = vld [vmem:[%s1 + $0x1c] sm:$0xf]
    %v34 = vld [vmem:[%s1 + $0x20] sm:$0xf]
    %v35 = vld [vmem:[%s1 + $0x24] sm:$0xf]
    %v36 = vld [vmem:[%s1 + $0x28] sm:$0xf]
    %v37 = vld [vmem:[%s1 + $0x2c] sm:$0xf]
    %v38 = vld [vmem:[%s1 + $0x30] sm:$0xf]
    %v39 = vld [vmem:[%s1 + $0x34] sm:$0xf]
    %v40 = vld [vmem:[%s1 + $0x38] sm:$0xf]
    %v41 = vld [vmem:[%s1 + $0x3c] sm:$0xf]
    %v42 = vld [vmem:[%s1 + $0x40] sm:$0xf]
    %v43 = vld [vmem:[%s1 + $0x44] sm:$0xf]
    %v44 = vld [vmem:[%s1 + $0x48] sm:$0xf]
    %v45 = vld [vmem:[%s1 + $0x4c] sm:$0xf]
    %v46 = vld [vmem:[%s1 + $0x50] sm:$0xf]
    %v47 = vld [vmem:[%s1 + $0x54] sm:$0xf]
    %v48 = vld [vmem:[%s1 + $0x58] sm:$0xf]
    %v49 = vld [vmem:[%s1 + $0x5c] sm:$0xf]
    %v50 = vld [vmem:[%s1 + $0x60] sm:$0xf]
    %v51 = vld [vmem:[%s1 + $0x64] sm:$0xf]
    %v52 = vld [vmem:[%s1 + $0x68] sm:$0xf]
    %v53 = vld [vmem:[%s1 + $0x6c] sm:$0xf]
    %v54 = vld [vmem:[%s1 + $0x70] sm:$0xf]
    %v55 = vld [vmem:[%s1 + $0x74] sm:$0xf]
    %v56 = vld [vmem:[%s1 + $0x78] sm:$0xf]
    %v57 = vld [vmem:[%s1 + $0x7c] sm:$0xf]
    %v58 = vld [vmem:[%s1 + $0x80] sm:$0xf]
    %v59 = vld [vmem:[%s1 + $0x84] sm:$0xf]
    %v60 = vld [vmem:[%s1 + $0x88] sm:$0xf]
    %v61 = vld [vmem:[%s1 + $0x8c] sm:$0xf]
    %v62 = vld [vmem:[%s1 + $0x90] sm:$0xf]
    %v63 = vld [vmem:[%s1 + $0x94] sm:$0xf]
    %v64 = vld [vmem:[%s1 + $0x98] sm:$0xf]
    %v65 = vld [vmem:[%s1 + $0x9c] sm:$0xf]
    %v66 = vld [vmem:[%s1 + $0xa0] sm:$0xf]
    %v67 = vld [vmem:[%s1 + $0xa4] sm:$0xf]
    %v68 = vld [vmem:[%s1 + $0xa8] sm:$0xf]
    %v69 = vld [vmem:[%s1 + $0xac] sm:$0xf]
    %v70 = vld [vmem:[%s1 + $0xb0] sm:$0xf]
    %v71 = vld [vmem:[%s1 + $0xb4] sm:$0xf]
    %v72 = vld [vmem:[%s1 + $0xb8] sm:$0xf]
    %v73 = vld [vmem:[%s1 + $0xbc] sm:$0xf]
    %v74 = vld [vmem:[%s1 + $0xc0] sm:$0xf]
    %v75 = vld [vmem:[%s1 + $0xc4] sm:$0xf]
    %v76 = vld [vmem:[%s1 + $0xc8] sm:$0xf]
    %v77 = vld [vmem:[%s1 + $0xcc] sm:$0xf]
    %v78 = vld [vmem:[%s1 + $0xd0] sm:$0xf]
    %v79 = vld [vmem:[%s1 + $0xd4] sm:$0xf]
    %v80 = vld [vmem:[%s1 + $0xd8] sm:$0xf]
    %v81 = vld [vmem:[%s1 + $0xdc] sm:$0xf]
    %v82 = vld [vmem:[%s1 + $0xe0] sm:$0xf]
    %v83 = vld [vmem:[%s1 + $0xe4] sm:$0xf]
    %v84 = vld [vmem:[%s1 + $0xe8] sm:$0xf]
    %v85 = vld [vmem:[%s1 + $0xec] sm:$0xf]
    %v86 = vld [vmem:[%s1 + $0xf0] sm:$0xf]
    %v87 = vld [vmem:[%s1 + $0xf4] sm:$0xf]
    %v88 = vld [vmem:[%s1 + $0xf8] sm:$0xf]
    %v89 = vld [vmem:[%s1 + $0xfc] sm:$0xf]
    %v90 = vld [vmem:[%s2] sm:$0x1]
    %v92 = vlaneseq
    %v93 = vshrl.u32 %v92, 7
    %v94 = vsub.s32 0, %v93
    %v95 = vrot.slane %v90, %v94
    %v99 = vunpack.c.l.s4 1966171168
    %v100 = vunpack.c.0.s8 %v99
    %v101 = vlaneseq
    %v102 = vshrl.u32 %v101, 7
    %v103 = vsub.s32 %v100, %v102
    %v104 = vrot.slane %v25, %v103
    %v105 = vcombine.high %v104, %v104
    %v107 = vunpack.c.l.s4 1966171168
    %v108 = vunpack.c.0.s8 %v107
    %v109 = vlaneseq
    %v110 = vshrl.u32 %v109, 7
    %v111 = vsub.s32 %v108, %v110
    %v112 = vrot.slane %v104, %v111
    %v114 = vunpack.c.l.s4 1966171168
    %v115 = vunpack.c.0.s8 %v114
    %v116 = vlaneseq
    %v117 = vshrl.u32 %v116, 7
    %v118 = vsub.s32 %v115, %v117
    %v119 = vrot.slane %v105, %v118
    %v120 = vcombine.high %v112, %v112
    %v121 = vcombine.high %v119, %v119
    %v190 = vunpack.c.l.b16 %v26
    %v191 = vunpack.c.l.b16 %v27
    %v192 = vunpack.c.l.b16 %v28
    %v193 = vunpack.c.l.b16 %v29
    %v194 = vunpack.c.l.b16 %v30
    %v195 = vunpack.c.l.b16 %v31
    %v196 = vunpack.c.l.b16 %v32
    %v197 = vunpack.c.l.b16 %v33
    %v198 = vunpack.c.l.b16 %v34
    %v199 = vunpack.c.l.b16 %v35
    %v200 = vunpack.c.l.b16 %v36
    %v201 = vunpack.c.l.b16 %v37
    %v202 = vunpack.c.l.b16 %v38
    %v203 = vunpack.c.l.b16 %v39
    %v204 = vunpack.c.l.b16 %v40
    %v205 = vunpack.c.l.b16 %v41
    %v206 = vunpack.c.l.b16 %v42
    %v207 = vunpack.c.l.b16 %v43
    %v208 = vunpack.c.l.b16 %v44
    %v209 = vunpack.c.l.b16 %v45
    %v210 = vunpack.c.l.b16 %v46
    %v211 = vunpack.c.l.b16 %v47
    %v212 = vunpack.c.l.b16 %v48
    %v213 = vunpack.c.l.b16 %v49
    %v214 = vunpack.c.l.b16 %v50
    %v215 = vunpack.c.l.b16 %v51
    %v216 = vunpack.c.l.b16 %v52
    %v217 = vunpack.c.l.b16 %v53
    %v218 = vunpack.c.l.b16 %v54
    %v219 = vunpack.c.l.b16 %v55
    %v220 = vunpack.c.l.b16 %v56
    %v221 = vunpack.c.l.b16 %v57
    %v222 = vunpack.c.l.b16 %v58
    %v223 = vunpack.c.l.b16 %v59
    %v224 = vunpack.c.l.b16 %v60
    %v225 = vunpack.c.l.b16 %v61
    %v226 = vunpack.c.l.b16 %v62
    %v227 = vunpack.c.l.b16 %v63
    %v228 = vunpack.c.l.b16 %v64
    %v229 = vunpack.c.l.b16 %v65
    %v230 = vunpack.c.l.b16 %v66
    %v231 = vunpack.c.l.b16 %v67
    %v232 = vunpack.c.l.b16 %v68
    %v233 = vunpack.c.l.b16 %v69
    %v234 = vunpack.c.l.b16 %v70
    %v235 = vunpack.c.l.b16 %v71
    %v236 = vunpack.c.l.b16 %v72
    %v237 = vunpack.c.l.b16 %v73
    %v238 = vunpack.c.l.b16 %v74
    %v239 = vunpack.c.l.b16 %v75
    %v240 = vunpack.c.l.b16 %v76
    %v241 = vunpack.c.l.b16 %v77
    %v242 = vunpack.c.l.b16 %v78
    %v243 = vunpack.c.l.b16 %v79
    %v244 = vunpack.c.l.b16 %v80
    %v245 = vunpack.c.l.b16 %v81
    %v246 = vunpack.c.l.b16 %v82
    %v247 = vunpack.c.l.b16 %v83
    %v248 = vunpack.c.l.b16 %v84
    %v249 = vunpack.c.l.b16 %v85
    %v250 = vunpack.c.l.b16 %v86
    %v251 = vunpack.c.l.b16 %v87
    %v252 = vunpack.c.l.b16 %v88
    %v253 = vunpack.c.l.b16 %v89
    %v254 = vpack.c.b16 %v191, %v190
    %v255 = vpack.c.b16 %v193, %v192
    %v256 = vpack.c.b16 %v195, %v194
    %v257 = vpack.c.b16 %v197, %v196
    %v258 = vpack.c.b16 %v199, %v198
    %v259 = vpack.c.b16 %v201, %v200
    %v260 = vpack.c.b16 %v203, %v202
    %v261 = vpack.c.b16 %v205, %v204
    %v262 = vpack.c.b16 %v207, %v206
    %v263 = vpack.c.b16 %v209, %v208
    %v264 = vpack.c.b16 %v211, %v210
    %v265 = vpack.c.b16 %v213, %v212
    %v266 = vpack.c.b16 %v215, %v214
    %v267 = vpack.c.b16 %v217, %v216
    %v268 = vpack.c.b16 %v219, %v218
    %v269 = vpack.c.b16 %v221, %v220
    %v270 = vpack.c.b16 %v223, %v222
    %v271 = vpack.c.b16 %v225, %v224
    %v272 = vpack.c.b16 %v227, %v226
    %v273 = vpack.c.b16 %v229, %v228
    %v274 = vpack.c.b16 %v231, %v230
    %v275 = vpack.c.b16 %v233, %v232
    %v276 = vpack.c.b16 %v235, %v234
    %v277 = vpack.c.b16 %v237, %v236
    %v278 = vpack.c.b16 %v239, %v238
    %v279 = vpack.c.b16 %v241, %v240
    %v280 = vpack.c.b16 %v243, %v242
    %v281 = vpack.c.b16 %v245, %v244
    %v282 = vpack.c.b16 %v247, %v246
    %v283 = vpack.c.b16 %v249, %v248
    %v284 = vpack.c.b16 %v251, %v250
    %v285 = vpack.c.b16 %v253, %v252
    %318 = vmatprep.subr.bf16.mxu0 0
    %319 = vmatpush1.bf16.msra.mxu0 %v261
    %320 = vmatprep.subr.bf16.mxu0 0
    %321 = vmatpush1.bf16.msra.mxu0 %v260
    %322 = vmatprep.subr.bf16.mxu0 0
    %323 = vmatpush1.bf16.msra.mxu0 %v259
    %324 = vmatprep.subr.bf16.mxu0 0
    %325 = vmatpush1.bf16.msra.mxu0 %v258
    %326 = vmatprep.subr.bf16.mxu0 0
    %327 = vmatpush1.bf16.msra.mxu0 %v257
    %328 = vmatprep.subr.bf16.mxu0 0
    %329 = vmatpush1.bf16.msra.mxu0 %v256
    %330 = vmatprep.subr.bf16.mxu0 0
    %331 = vmatpush1.bf16.msra.mxu0 %v255
    %332 = vmatprep.subr.bf16.mxu0 0
    %333 = vmatpush1.bf16.msra.mxu0 %v254
    %334 = vmatprep.subr.bf16.mxu0 0
    %335 = vmatpush2.bf16.msra.mxu0 %v269
    %336 = vmatprep.subr.bf16.mxu0 0
    %337 = vmatpush2.bf16.msra.mxu0 %v268
    %338 = vmatprep.subr.bf16.mxu0 0
    %339 = vmatpush2.bf16.msra.mxu0 %v267
    %340 = vmatprep.subr.bf16.mxu0 0
    %341 = vmatpush2.bf16.msra.mxu0 %v266
    %342 = vmatprep.subr.bf16.mxu0 0
    %343 = vmatpush2.bf16.msra.mxu0 %v265
    %344 = vmatprep.subr.bf16.mxu0 0
    %345 = vmatpush2.bf16.msra.mxu0 %v264
    %346 = vmatprep.subr.bf16.mxu0 0
    %347 = vmatpush2.bf16.msra.mxu0 %v263
    %348 = vmatprep.subr.bf16.mxu0 0
    %349 = vmatpush2.bf16.msra.mxu0 %v262
    %350 = vmatprep.mubr.bf16.mxu0 %v119
    %351 = vmatmul.mubr.bf16.gmra.mxu0 %v112
    %v352 = vpop.f32.mrf.mxu0
    %v353 = vadd.f32 %v95, %v352
    %v354 = vpop.f32.mrf.mxu0
    %v355 = vpop.f32.mrf.mxu0
    %v356 = vpop.f32.mrf.mxu0
    %357 = vdwg.mxu0
    %358 = vmatprep.subr.bf16.mxu0 0
    %359 = vmatpush1.bf16.msra.mxu0 %v277
    %360 = vmatprep.subr.bf16.mxu0 0
    %361 = vmatpush1.bf16.msra.mxu0 %v276
    %362 = vmatprep.subr.bf16.mxu0 0
    %363 = vmatpush1.bf16.msra.mxu0 %v275
    %364 = vmatprep.subr.bf16.mxu0 0
    %365 = vmatpush1.bf16.msra.mxu0 %v274
    %366 = vmatprep.subr.bf16.mxu0 0
    %367 = vmatpush1.bf16.msra.mxu0 %v273
    %368 = vmatprep.subr.bf16.mxu0 0
    %369 = vmatpush1.bf16.msra.mxu0 %v272
    %370 = vmatprep.subr.bf16.mxu0 0
    %371 = vmatpush1.bf16.msra.mxu0 %v271
    %372 = vmatprep.subr.bf16.mxu0 0
    %373 = vmatpush1.bf16.msra.mxu0 %v270
    %374 = vmatprep.subr.bf16.mxu0 0
    %375 = vmatpush2.bf16.msra.mxu0 %v285
    %376 = vmatprep.subr.bf16.mxu0 0
    %377 = vmatpush2.bf16.msra.mxu0 %v284
    %378 = vmatprep.subr.bf16.mxu0 0
    %379 = vmatpush2.bf16.msra.mxu0 %v283
    %380 = vmatprep.subr.bf16.mxu0 0
    %381 = vmatpush2.bf16.msra.mxu0 %v282
    %382 = vmatprep.subr.bf16.mxu0 0
    %383 = vmatpush2.bf16.msra.mxu0 %v281
    %384 = vmatprep.subr.bf16.mxu0 0
    %385 = vmatpush2.bf16.msra.mxu0 %v280
    %386 = vmatprep.subr.bf16.mxu0 0
    %387 = vmatpush2.bf16.msra.mxu0 %v279
    %388 = vmatprep.subr.bf16.mxu0 0
    %389 = vmatpush2.bf16.msra.mxu0 %v278
    %390 = vmatprep.mubr.bf16.mxu0 %v121
    %391 = vmatmul.mubr.bf16.gmra.mxu0 %v120
    %v392 = vpop.f32.mrf.mxu0
    %v393 = vadd.f32 %v353, %v392
    %v394 = vpop.f32.mrf.mxu0
    %v395 = vpop.f32.mrf.mxu0
    %v396 = vpop.f32.mrf.mxu0
    %397 = vdwg.mxu0
    %v398 = vmul.f32 %v393, 0.2
    %v399 = vmax.f32 %v393, %v398
    %v400 = vld [vmem:[%s3] sm:$0xf]
    %v401 = vld [vmem:[%s3 + $0x4] sm:$0xf]
    %v402 = vld [vmem:[%s3 + $0x8] sm:$0xf]
    %v403 = vld [vmem:[%s3 + $0xc] sm:$0xf]
    %v404 = vld [vmem:[%s3 + $0x10] sm:$0xf]
    %v405 = vld [vmem:[%s3 + $0x14] sm:$0xf]
    %v406 = vld [vmem:[%s3 + $0x18] sm:$0xf]
    %v407 = vld [vmem:[%s3 + $0x1c] sm:$0xf]
    %v408 = vpack.c.bf16 %v399, %v399
    %v409 = vld [vmem:[%s4] sm:$0x1]
    %v411 = vlaneseq
    %v412 = vshrl.u32 %v411, 7
    %v413 = vsub.s32 0, %v412
    %v414 = vrot.slane %v409, %v413
    %v424 = vunpack.c.l.b16 %v400
    %v425 = vunpack.c.l.b16 %v401
    %v426 = vunpack.c.l.b16 %v402
    %v427 = vunpack.c.l.b16 %v403
    %v428 = vunpack.c.l.b16 %v404
    %v429 = vunpack.c.l.b16 %v405
    %v430 = vunpack.c.l.b16 %v406
    %v431 = vunpack.c.l.b16 %v407
    %v432 = vpack.c.b16 %v425, %v424
    %v433 = vpack.c.b16 %v427, %v426
    %v434 = vpack.c.b16 %v429, %v428
    %v435 = vpack.c.b16 %v431, %v430
    %vm440 = vcmask 523264
    %v442 = vsel %vm440, %v408, 0
    %444 = vmatprep.subr.bf16.mxu0 0
    %445 = vmatpush1.bf16.msra.mxu0 0
    %446 = vmatprep.subr.bf16.mxu0 0
    %447 = vmatpush1.bf16.msra.mxu0 0
    %448 = vmatprep.subr.bf16.mxu0 0
    %449 = vmatpush1.bf16.msra.mxu0 0
    %450 = vmatprep.subr.bf16.mxu0 0
    %451 = vmatpush1.bf16.msra.mxu0 0
    %452 = vmatprep.subr.bf16.mxu0 0
    %453 = vmatpush1.bf16.msra.mxu0 %v435
    %454 = vmatprep.subr.bf16.mxu0 0
    %455 = vmatpush1.bf16.msra.mxu0 %v434
    %456 = vmatprep.subr.bf16.mxu0 0
    %457 = vmatpush1.bf16.msra.mxu0 %v433
    %458 = vmatprep.subr.bf16.mxu0 0
    %459 = vmatpush1.bf16.msra.mxu0 %v432
    %460 = vmatprep.subr.bf16.mxu0 0
    %461 = vmatpush2.bf16.msra.mxu0 0
    %462 = vmatprep.subr.bf16.mxu0 0
    %463 = vmatpush2.bf16.msra.mxu0 0
    %464 = vmatprep.subr.bf16.mxu0 0
    %465 = vmatpush2.bf16.msra.mxu0 0
    %466 = vmatprep.subr.bf16.mxu0 0
    %467 = vmatpush2.bf16.msra.mxu0 0
    %468 = vmatprep.subr.bf16.mxu0 0
    %469 = vmatpush2.bf16.msra.mxu0 0
    %470 = vmatprep.subr.bf16.mxu0 0
    %471 = vmatpush2.bf16.msra.mxu0 0
    %472 = vmatprep.subr.bf16.mxu0 0
    %473 = vmatpush2.bf16.msra.mxu0 0
    %474 = vmatprep.subr.bf16.mxu0 0
    %475 = vmatpush2.bf16.msra.mxu0 0
    %476 = vmatprep.mubr.bf16.mxu0 0
    %477 = vmatmul.mubr.bf16.gmra.mxu0 %v442
    %v478 = vpop.f32.mrf.mxu0
    %v479 = vadd.f32 %v414, %v478
    %v480 = vpop.f32.mrf.mxu0
    %v481 = vpop.f32.mrf.mxu0
    %v482 = vpop.f32.mrf.mxu0
    %483 = vdwg.mxu0
    %v484 = vmul.f32 %v479, 0.2
    %v485 = vmax.f32 %v479, %v484
    %vm486 = vcmask 517120
    %v487 = vsel %vm486, %v485, 0.0
    %488 = vadd.xlane.f32.xlu0 %v487
    %v489 = vpop.xlane.xlu0 %488
    %v490 = vrcp.pop 64.0
    %v491 = vmul.f32 %v489, %v490
    %v492 = vmul.f32 %v485, %v485
    %v493 = vsel %vm486, %v492, 0.0
    %494 = vadd.xlane.f32.xlu0 %v493
    %v495 = vpop.xlane.xlu0 %494
    %v496 = vmul.f32 %v495, %v490
    %v497 = vmul.f32 %v491, %v491
    %v498 = vsub.f32 %v496, %v497
    %v499 = vmax.f32 %v498, 0.0
    %v500 = vsub.f32 %v485, %v491
    %v501 = vadd.f32 %v499, 1e-05
    %v502 = vrsqrt.pop %v501
    %v503 = vmul.f32 %v500, %v502
    %v504 = vld [vmem:[%s5] sm:$0xf]
    %v505 = vld [vmem:[%s5 + $0x4] sm:$0xf]
    %v506 = vld [vmem:[%s5 + $0x8] sm:$0xf]
    %v507 = vld [vmem:[%s5 + $0xc] sm:$0xf]
    %v508 = vld [vmem:[%s5 + $0x10] sm:$0xf]
    %v509 = vld [vmem:[%s5 + $0x14] sm:$0xf]
    %v510 = vld [vmem:[%s5 + $0x18] sm:$0xf]
    %v511 = vld [vmem:[%s5 + $0x1c] sm:$0xf]
    %v512 = vpack.c.bf16 %v503, %v503
    %v521 = vunpack.c.l.b16 %v504
    %v522 = vunpack.c.l.b16 %v505
    %v523 = vunpack.c.l.b16 %v506
    %v524 = vunpack.c.l.b16 %v507
    %v525 = vunpack.c.l.b16 %v508
    %v526 = vunpack.c.l.b16 %v509
    %v527 = vunpack.c.l.b16 %v510
    %v528 = vunpack.c.l.b16 %v511
    %v529 = vpack.c.b16 %v522, %v521
    %v530 = vpack.c.b16 %v524, %v523
    %v531 = vpack.c.b16 %v526, %v525
    %v532 = vpack.c.b16 %v528, %v527
    %v538 = vsel %vm440, %v512, 0
    %540 = vmatprep.subr.bf16.mxu0 0
    %541 = vmatpush1.bf16.msra.mxu0 0
    %542 = vmatprep.subr.bf16.mxu0 0
    %543 = vmatpush1.bf16.msra.mxu0 0
    %544 = vmatprep.subr.bf16.mxu0 0
    %545 = vmatpush1.bf16.msra.mxu0 0
    %546 = vmatprep.subr.bf16.mxu0 0
    %547 = vmatpush1.bf16.msra.mxu0 0
    %548 = vmatprep.subr.bf16.mxu0 0
    %549 = vmatpush1.bf16.msra.mxu0 %v532
    %550 = vmatprep.subr.bf16.mxu0 0
    %551 = vmatpush1.bf16.msra.mxu0 %v531
    %552 = vmatprep.subr.bf16.mxu0 0
    %553 = vmatpush1.bf16.msra.mxu0 %v530
    %554 = vmatprep.subr.bf16.mxu0 0
    %555 = vmatpush1.bf16.msra.mxu0 %v529
    %556 = vmatprep.subr.bf16.mxu0 0
    %557 = vmatpush2.bf16.msra.mxu0 0
    %558 = vmatprep.subr.bf16.mxu0 0
    %559 = vmatpush2.bf16.msra.mxu0 0
    %560 = vmatprep.subr.bf16.mxu0 0
    %561 = vmatpush2.bf16.msra.mxu0 0
    %562 = vmatprep.subr.bf16.mxu0 0
    %563 = vmatpush2.bf16.msra.mxu0 0
    %564 = vmatprep.subr.bf16.mxu0 0
    %565 = vmatpush2.bf16.msra.mxu0 0
    %566 = vmatprep.subr.bf16.mxu0 0
    %567 = vmatpush2.bf16.msra.mxu0 0
    %568 = vmatprep.subr.bf16.mxu0 0
    %569 = vmatpush2.bf16.msra.mxu0 0
    %570 = vmatprep.subr.bf16.mxu0 0
    %571 = vmatpush2.bf16.msra.mxu0 0
    %572 = vmatprep.mubr.bf16.mxu0 0
    %573 = vmatmul.mubr.bf16.gmra.mxu0 %v538
    %v574 = vpop.f32.mrf.mxu0
    %v575 = vadd.f32 0.0, %v574
    %v576 = vpop.f32.mrf.mxu0
    %v577 = vpop.f32.mrf.mxu0
    %v578 = vpop.f32.mrf.mxu0
    %579 = vdwg.mxu0
    %v580 = vlaneseq
    %v581 = vand.u32 %v580, 127
    %vm582 = vcmp.lt.s32.totalorder %v581, 4
    %v583 = vsel %vm582, %v575, -1e+30
    %vm584 = vcmask 1041408
    %v585 = vsel %vm584, %v583, -inf
    %586 = vmax.xlane.f32.xlu0 %v585
    %v587 = vpop.xlane.xlu0 %586
    %v588 = vsub.f32 %v583, %v587
    %v589 = vmul.f32 %v588, 1.442695
    %v590 = vpow.pop %v589
    %v591 = vsel %vm584, %v590, 0.0
    %592 = vadd.xlane.f32.xlu0 %v591
    %v593 = vpop.xlane.xlu0 %592
    %v594 = vrcp.pop %v593
    %v595 = vmul.f32 %v590, %v594
    %596 = vst [vmem:[#allocation2] sm:$0x3] %v595
    // Predicated region
    $region26: #{model_emo_forward.1} parent=1 // pred_check
      _
    $region27: #{model_emo_forward.1} parent=1 // pred_check_branch
      %598 = sbr.rel (0) target = $region29
    $region28: #{model_emo_forward.1} parent=1 // pred_region
      %s600 = ssub.s32 32, 32
      %601 = vsyncadd [#allocation3], %s600
      %s603 = sshll.u32 [#allocation2], 4
      %s604 = int_to_ptr.vmem [resolvable:$true] %s603
      %606 = dma.vmem_to_hbm [thread:$0]  %s604, 32, %s6, [#allocation3]
    $region29: #{model_emo_forward.1} parent=1 // pred_fallthru
      _
    // Predicated region
    $region30: #{model_emo_forward.1} parent=1 // pred_check
      _
    $region31: #{model_emo_forward.1} parent=1 // pred_check_branch
      %608 = sbr.rel (0) target = $region33
    $region32: #{model_emo_forward.1} parent=1 // pred_region
      %609 = dma.done [#allocation3], 32
    $region33: #{model_emo_forward.1} parent=1 // pred_fallthru
      _
    %610 = vsyncpa [#allocation3], 1

</llo_original>
